<compile_context>
chip_gen: v7x
topology: tpu7x:2x2x1
jax: 0.10.0
libtpu: 0.0.40
codegen_flags: <defaults>
</compile_context>

<pallas_src>
import functools

import jax
import jax.numpy as jnp
from jax.experimental import pallas as pl
from jax.experimental.pallas import tpu as pltpu


def _round_up(x, m):
    return ((x + m - 1) // m) * m


def _vmem_budgets():
    """(vmem_limit_bytes, per-step working-set budget) from the chip's VMEM."""
    cap = 64 * 1024 * 1024
    try:
        cap = int(getattr(pltpu.get_tpu_info(), "vmem_capacity_bytes", cap))
    except Exception:
        pass
    limit = (cap * 3) // 4            # 96 MiB on v5e/v6e (128 phys), 48 MiB on v7x (64 phys)
    budget = limit - (8 << 20)        # headroom for Mosaic-internal scratch / padding
    return limit, budget


def _choose_tiles(B, M, C, itemsize, budget):
    """Pick (tB, tM, tC) under the VMEM budget, honoring (8,128)/full-dim rules."""

    def fits(tB, tM, tC):
        blk = tB * tM * tC
        vmem = 2 * blk * itemsize                 # double-buffered logits block
        vmem += blk * 4                           # f32 working set of one chunk
        vmem += tB * max(tC, 128) * 4             # s_acc scratch (lane padded)
        vmem += 6 * _round_up(tB, 8) * 128 * 4    # m/l/picked scratch + targets x2
        return vmem + (1 << 20) <= budget

    tB0 = B if B <= 8 else 8
    tM0 = M if M <= 8 else 8

    # ---- class (lane) tiling: prefer full C, else multiples of 128 ----
    if fits(tB0, tM0, C):
        tC = C
    else:
        per_tc = tB0 * tM0 * (2 * itemsize + 4) + tB0 * 4
        tC = max(128, ((budget - (2 << 20)) // per_tc) // 128 * 128)
        tC = min(tC, _round_up(C, 128))
        while tC > 128 and not fits(tB0, tM0, tC):
            tC -= 128

    # ---- view (sublane) tiling: full M if it fits, else multiples of 8 ----
    if M <= 8 or fits(tB0, M, tC):
        tM = M
    else:
        tM = max(8, (M // 8) * 8)
        while tM > 8 and not fits(tB0, tM, tC):
            tM -= 8

    # ---- batch tiling: as large as fits, multiple of 8 (== B for tiny B) ----
    if B <= 8:
        tB = B
    else:
        per_row = tM * tC * (2 * itemsize + 4) + max(tC, 128) * 4 + 6 * 128 * 4
        tB = max(8, min(_round_up(B, 8), (budget // per_row) // 8 * 8))
        while tB > 8 and not fits(tB, tM, tC):
            tB -= 8
        # >= 2 batch tiles (v7x megacore) and balanced tiles (no fat ragged tail)
        nB = max(2, -(-B // tB))
        tB = max(8, min(tB, _round_up(-(-B // nB), 8)))

    return tB, tM, tC


def _fbar_ce_kernel(logits_ref, targets_ref, out_ref,
                    s_acc, m_run, l_run, picked, *, B, M, C):
    tB, tM, tC = logits_ref.shape
    b = pl.program_id(0)
    c = pl.program_id(1)
    m = pl.program_id(2)
    last_c = pl.num_programs(1) - 1
    last_m = pl.num_programs(2) - 1

    @pl.when(jnp.logical_and(c == 0, m == 0))
    def _():
        m_run[...] = jnp.full_like(m_run, -jnp.inf)
        l_run[...] = jnp.zeros_like(l_run)
        picked[...] = jnp.zeros_like(picked)

    @pl.when(m == 0)
    def _():
        s_acc[...] = jnp.zeros_like(s_acc)

    # Stream one (tB, tM, tC) chunk: cast fused into the view-sum (no full f32
    # tile), accumulate into the (tB, tC) scratch.
    x = logits_ref[...].astype(jnp.float32)
    if M % tM != 0:  # ragged last view-chunk -> zero padded view rows
        view_ids = jax.lax.broadcasted_iota(jnp.int32, (1, tM, 1), 1) + m * tM
        x = jnp.where(view_ids < M, x, 0.0)
    s_acc[...] += jnp.sum(x, axis=1)

    @pl.when(m == last_m)
    def _():
        s_chunk = s_acc[...] * (1.0 / M)                      # (tB, tC): mean over views
        cls_ids = jax.lax.broadcasted_iota(jnp.int32, (tB, tC), 1) + c * tC
        if C % tC != 0:  # ragged last class chunk -> mask padded classes
            s_lse = jnp.where(cls_ids < C, s_chunk, -jnp.inf)
        else:
            s_lse = s_chunk

        # Online logsumexp across class chunks.
        chunk_max = jnp.max(s_lse, axis=-1, keepdims=True)    # (tB, 1)
        new_max = jnp.maximum(m_run[...], chunk_max)
        l_run[...] = (l_run[...] * jnp.exp(m_run[...] - new_max)
                      + jnp.sum(jnp.exp(s_lse - new_max), axis=-1, keepdims=True))
        m_run[...] = new_max

        # Target-class logit (lives in exactly one class chunk).
        tgt = targets_ref[...]                                # (tB, 1) int32
        picked[...] += jnp.sum(jnp.where(cls_ids == tgt, s_chunk, 0.0),
                               axis=-1, keepdims=True)

        @pl.when(c == last_c)
        def _():
            loss_rows = m_run[...] + jnp.log(l_run[...]) - picked[...]   # (tB, 1)
            if B % tB != 0:  # ragged last batch tile -> drop padded rows
                row_ids = jax.lax.broadcasted_iota(jnp.int32, (tB, 1), 0) + b * tB
                loss_rows = jnp.where(row_ids < B, loss_rows, 0.0)
            out_ref[...] = jnp.sum(loss_rows).reshape(1, 1, 1)


def fbar_cross_entropy_loss(logits, targets, *, tiles=None):
    """logits: (B, M, C) float (any dtype), targets: (B,) int -> scalar f32 loss."""
    # TODO(synk): nn.CrossEntropyLoss ignore_index=-100 / class weights are not
    # implemented; defaults (all targets valid, mean reduction) are assumed.
    B, M, C = logits.shape
    targets_2d = targets.reshape(B, 1).astype(jnp.int32)

    vmem_limit, block_budget = _vmem_budgets()
    if tiles is None:
        tB, tM, tC = _choose_tiles(B, M, C, jnp.dtype(logits.dtype).itemsize,
                                   block_budget)
    else:
        tB, tM, tC = tiles
    nB, nC, nM = pl.cdiv(B, tB), pl.cdiv(C, tC), pl.cdiv(M, tM)

    kernel = functools.partial(_fbar_ce_kernel, B=B, M=M, C=C)
    partials = pl.pallas_call(
        kernel,
        out_shape=jax.ShapeDtypeStruct((nB, 1, 1), jnp.float32),
        grid=(nB, nC, nM),                      # views innermost, then classes
        in_specs=[
            # native-dtype logits chunk (bf16 stays bf16 on the wire)
            pl.BlockSpec((tB, tM, tC), lambda b, c, m: (b, m, c)),
            # per-tile targets block (tiny) instead of the whole array per step
            pl.BlockSpec((tB, 1), lambda b, c, m: (b, 0)),
        ],
        out_specs=pl.BlockSpec((1, 1, 1), lambda b, c, m: (b, 0, 0)),
        scratch_shapes=[
            pltpu.VMEM((tB, tC), jnp.float32),  # s_acc : sum over views
            pltpu.VMEM((tB, 1), jnp.float32),   # m_run : running max (online LSE)
            pltpu.VMEM((tB, 1), jnp.float32),   # l_run : running sum (online LSE)
            pltpu.VMEM((tB, 1), jnp.float32),   # picked: S[b, target_b]
        ],
        compiler_params=pltpu.CompilerParams(
            dimension_semantics=("parallel", "arbitrary", "arbitrary"),
            vmem_limit_bytes=vmem_limit,
        ),
    )(logits, targets_2d)

    return jnp.sum(partials) / B


def _reference(logits, targets):
    lsm = jax.nn.log_softmax(logits.astype(jnp.float32), axis=-1)
    avg = jnp.mean(lsm, axis=1)
    logp = jax.nn.log_softmax(avg, axis=-1)
    nll = -jnp.take_along_axis(logp, targets[:, None].astype(jnp.int32), axis=-1)
    return jnp.mean(nll)


if __name__ == "__main__":
    key = jax.random.PRNGKey(0)
    k1, k2, k3, k4, k5, k6 = jax.random.split(key, 6)

    # 1) basic f32 path, single-block tiles.
    B, M, C = 4, 6, 32
    logits = jax.random.normal(k1, (B, M, C), dtype=jnp.float32)
    targets = jax.random.randint(k2, (B,), 0, C, dtype=jnp.int32)
    loss = jax.block_until_ready(fbar_cross_entropy_loss(logits, targets))
    ref = jax.block_until_ready(_reference(logits, targets))
    assert jnp.allclose(loss, ref, atol=1e-4, rtol=1e-4), (loss, ref)

    # 2) bf16 on the wire, f32 accumulation in-kernel.
    B2, M2, C2 = 8, 3, 160
    logits2 = jax.random.normal(k3, (B2, M2, C2), dtype=jnp.float32)
    targets2 = jax.random.randint(k4, (B2,), 0, C2, dtype=jnp.int32)
    loss2 = jax.block_until_ready(
        fbar_cross_entropy_loss(logits2.astype(jnp.bfloat16), targets2))
    ref2 = jax.block_until_ready(_reference(logits2.astype(jnp.bfloat16), targets2))
    assert jnp.allclose(loss2, ref2, atol=2e-2, rtol=2e-2), (loss2, ref2)

    # 3) chunked path: ragged batch / view / class tiles + online logsumexp.
    B3, M3, C3 = 20, 12, 200
    logits3 = jax.random.normal(k5, (B3, M3, C3), dtype=jnp.float32)
    targets3 = jax.random.randint(k6, (B3,), 0, C3, dtype=jnp.int32)
    loss3 = jax.block_until_ready(
        fbar_cross_entropy_loss(logits3, targets3, tiles=(16, 8, 128)))
    ref3 = jax.block_until_ready(_reference(logits3, targets3))
    assert jnp.allclose(loss3, ref3, atol=1e-4, rtol=1e-4), (loss3, ref3)

    print("KERNEL_OK")
</pallas_src>

<mosaic_0001>
module attributes {stable_mosaic.version = 11 : i64} {
  func.func @_fbar_ce_kernel(%arg0: i32, %arg1: i32, %arg2: i32, %arg3: memref<4x6x32xf32, #tpu.memory_space<vmem>>, %arg4: memref<4x1xi32, #tpu.memory_space<vmem>>, %arg5: memref<1x1x1xf32, #tpu.memory_space<vmem>>, %arg6: memref<4x32xf32, #tpu.memory_space<vmem>>, %arg7: memref<4x1xf32, #tpu.memory_space<vmem>>, %arg8: memref<4x1xf32, #tpu.memory_space<vmem>>, %arg9: memref<4x1xf32, #tpu.memory_space<vmem>>) attributes {dimension_semantics = [#tpu.dimension_semantics<parallel>, #tpu.dimension_semantics<arbitrary>, #tpu.dimension_semantics<arbitrary>], iteration_bounds = array<i64: 1, 1, 1>, scalar_prefetch = 0 : i64, scratch_operands = 4 : i64, tpu.core_type = #tpu.core_type<tc>, window_params = [{transform_indices = @transform_0, window_bounds = array<i64: 4, 6, 32>}, {transform_indices = @transform_1, window_bounds = array<i64: 4, 1>}, {transform_indices = @transform_2, window_bounds = array<i64: 1, 1, 1>}]} {
    %c0_i32 = arith.constant 0 : i32
    %0 = arith.cmpi eq, %arg1, %c0_i32 : i32
    %c0_i32_0 = arith.constant 0 : i32
    %1 = arith.cmpi eq, %arg2, %c0_i32_0 : i32
    %2 = arith.andi %0, %1 : i1
    %3 = arith.extui %2 : i1 to i32
    %c0_i32_1 = arith.constant 0 : i32
    %4 = arith.cmpi ne, %3, %c0_i32_1 : i32
    scf.if %4 {
      %cst_12 = arith.constant 0xFF800000 : f32
      %16 = vector.broadcast %cst_12 : f32 to vector<4x1xf32>
      %c0_13 = arith.constant 0 : index
      %c0_14 = arith.constant 0 : index
      %17 = vector.load %arg7[%c0_13, %c0_14] : memref<4x1xf32, #tpu.memory_space<vmem>>, vector<4x1xf32>
      tpu.vector_store %arg7[%c0_13, %c0_14], %16 {strides = array<i32>} : memref<4x1xf32, #tpu.memory_space<vmem>>, vector<4x1xf32>,
      %cst_15 = arith.constant 0.000000e+00 : f32
      %18 = vector.broadcast %cst_15 : f32 to vector<4x1xf32>
      %c0_16 = arith.constant 0 : index
      %c0_17 = arith.constant 0 : index
      %19 = vector.load %arg8[%c0_16, %c0_17] : memref<4x1xf32, #tpu.memory_space<vmem>>, vector<4x1xf32>
      tpu.vector_store %arg8[%c0_16, %c0_17], %18 {strides = array<i32>} : memref<4x1xf32, #tpu.memory_space<vmem>>, vector<4x1xf32>,
      %cst_18 = arith.constant 0.000000e+00 : f32
      %20 = vector.broadcast %cst_18 : f32 to vector<4x1xf32>
      %c0_19 = arith.constant 0 : index
      %c0_20 = arith.constant 0 : index
      %21 = vector.load %arg9[%c0_19, %c0_20] : memref<4x1xf32, #tpu.memory_space<vmem>>, vector<4x1xf32>
      tpu.vector_store %arg9[%c0_19, %c0_20], %20 {strides = array<i32>} : memref<4x1xf32, #tpu.memory_space<vmem>>, vector<4x1xf32>,
    } else {
    }
    %c0_i32_2 = arith.constant 0 : i32
    %5 = arith.cmpi eq, %arg2, %c0_i32_2 : i32
    %6 = arith.extui %5 : i1 to i32
    %c0_i32_3 = arith.constant 0 : i32
    %7 = arith.cmpi ne, %6, %c0_i32_3 : i32
    scf.if %7 {
      %cst_12 = arith.constant 0.000000e+00 : f32
      %16 = vector.broadcast %cst_12 : f32 to vector<4x32xf32>
      %c0_13 = arith.constant 0 : index
      %c0_14 = arith.constant 0 : index
      %17 = vector.load %arg6[%c0_13, %c0_14] : memref<4x32xf32, #tpu.memory_space<vmem>>, vector<4x32xf32>
      tpu.vector_store %arg6[%c0_13, %c0_14], %16 {strides = array<i32>} : memref<4x32xf32, #tpu.memory_space<vmem>>, vector<4x32xf32>,
    } else {
    }
    %c0 = arith.constant 0 : index
    %c0_4 = arith.constant 0 : index
    %c0_5 = arith.constant 0 : index
    %8 = vector.load %arg3[%c0, %c0_4, %c0_5] : memref<4x6x32xf32, #tpu.memory_space<vmem>>, vector<4x6x32xf32>
    %c0_6 = arith.constant 0 : index
    %c0_7 = arith.constant 0 : index
    %9 = vector.load %arg6[%c0_6, %c0_7] : memref<4x32xf32, #tpu.memory_space<vmem>>, vector<4x32xf32>
    %cst = arith.constant dense<0.000000e+00> : vector<4x32xf32>
    %10 = vector.multi_reduction <add>, %8, %cst [1] : vector<4x6x32xf32> to vector<4x32xf32>
    %11 = arith.addf %9, %10 : vector<4x32xf32>
    %c0_8 = arith.constant 0 : index
    %c0_9 = arith.constant 0 : index
    %12 = vector.load %arg6[%c0_8, %c0_9] : memref<4x32xf32, #tpu.memory_space<vmem>>, vector<4x32xf32>
    tpu.vector_store %arg6[%c0_8, %c0_9], %11 {strides = array<i32>} : memref<4x32xf32, #tpu.memory_space<vmem>>, vector<4x32xf32>,
    %c0_i32_10 = arith.constant 0 : i32
    %13 = arith.cmpi eq, %arg2, %c0_i32_10 : i32
    %14 = arith.extui %13 : i1 to i32
    %c0_i32_11 = arith.constant 0 : i32
    %15 = arith.cmpi ne, %14, %c0_i32_11 : i32
    scf.if %15 {
      %c0_12 = arith.constant 0 : index
      %c0_13 = arith.constant 0 : index
      %16 = vector.load %arg6[%c0_12, %c0_13] : memref<4x32xf32, #tpu.memory_space<vmem>>, vector<4x32xf32>
      %cst_14 = arith.constant 0.166666672 : f32
      %17 = vector.broadcast %cst_14 : f32 to vector<4x32xf32>
      %18 = arith.mulf %16, %17 : vector<4x32xf32>
      %19 = tpu.iota {dimensions = array<i32: 1>} : vector<4x32xi32>
      %c32_i32 = arith.constant 32 : i32
      %20 = arith.muli %arg1, %c32_i32 : i32
      %21 = vector.broadcast %20 : i32 to vector<4x32xi32>
      %22 = arith.addi %19, %21 : vector<4x32xi32>
      %cst_15 = arith.constant dense<0xFF800000> : vector<4xf32>
      %23 = vector.multi_reduction <maximumf>, %18, %cst_15 [1] : vector<4x32xf32> to vector<4xf32>
      %24 = vector.shape_cast %23 : vector<4xf32> to vector<4x1xf32>
      %c0_16 = arith.constant 0 : index
      %c0_17 = arith.constant 0 : index
      %25 = vector.load %arg7[%c0_16, %c0_17] : memref<4x1xf32, #tpu.memory_space<vmem>>, vector<4x1xf32>
      %26 = arith.maximumf %25, %24 : vector<4x1xf32>
      %c0_18 = arith.constant 0 : index
      %c0_19 = arith.constant 0 : index
      %27 = vector.load %arg8[%c0_18, %c0_19] : memref<4x1xf32, #tpu.memory_space<vmem>>, vector<4x1xf32>
      %c0_20 = arith.constant 0 : index
      %c0_21 = arith.constant 0 : index
      %28 = vector.load %arg7[%c0_20, %c0_21] : memref<4x1xf32, #tpu.memory_space<vmem>>, vector<4x1xf32>
      %29 = arith.subf %28, %26 : vector<4x1xf32>
      %30 = math.exp %29 : vector<4x1xf32>
      %31 = arith.mulf %27, %30 : vector<4x1xf32>
      %32 = vector.broadcast %26 : vector<4x1xf32> to vector<4x32xf32>
      %33 = arith.subf %18, %32 : vector<4x32xf32>
      %34 = math.exp %33 : vector<4x32xf32>
      %cst_22 = arith.constant dense<0.000000e+00> : vector<4xf32>
      %35 = vector.multi_reduction <add>, %34, %cst_22 [1] : vector<4x32xf32> to vector<4xf32>
      %36 = vector.shape_cast %35 : vector<4xf32> to vector<4x1xf32>
      %37 = arith.addf %31, %36 : vector<4x1xf32>
      %c0_23 = arith.constant 0 : index
      %c0_24 = arith.constant 0 : index
      %38 = vector.load %arg8[%c0_23, %c0_24] : memref<4x1xf32, #tpu.memory_space<vmem>>, vector<4x1xf32>
      tpu.vector_store %arg8[%c0_23, %c0_24], %37 {strides = array<i32>} : memref<4x1xf32, #tpu.memory_space<vmem>>, vector<4x1xf32>,
      %c0_25 = arith.constant 0 : index
      %c0_26 = arith.constant 0 : index
      %39 = vector.load %arg7[%c0_25, %c0_26] : memref<4x1xf32, #tpu.memory_space<vmem>>, vector<4x1xf32>
      tpu.vector_store %arg7[%c0_25, %c0_26], %26 {strides = array<i32>} : memref<4x1xf32, #tpu.memory_space<vmem>>, vector<4x1xf32>,
      %c0_27 = arith.constant 0 : index
      %c0_28 = arith.constant 0 : index
      %40 = vector.load %arg4[%c0_27, %c0_28] : memref<4x1xi32, #tpu.memory_space<vmem>>, vector<4x1xi32>
      %c0_29 = arith.constant 0 : index
      %c0_30 = arith.constant 0 : index
      %41 = vector.load %arg9[%c0_29, %c0_30] : memref<4x1xf32, #tpu.memory_space<vmem>>, vector<4x1xf32>
      %42 = vector.broadcast %40 : vector<4x1xi32> to vector<4x32xi32>
      %43 = arith.cmpi eq, %22, %42 : vector<4x32xi32>
      %cst_31 = arith.constant 0.000000e+00 : f32
      %44 = vector.broadcast %cst_31 : f32 to vector<4x32xf32>
      %45 = arith.select %43, %18, %44 : vector<4x32xi1>, vector<4x32xf32>
      %cst_32 = arith.constant dense<0.000000e+00> : vector<4xf32>
      %46 = vector.multi_reduction <add>, %45, %cst_32 [1] : vector<4x32xf32> to vector<4xf32>
      %47 = vector.shape_cast %46 : vector<4xf32> to vector<4x1xf32>
      %48 = arith.addf %41, %47 : vector<4x1xf32>
      %c0_33 = arith.constant 0 : index
      %c0_34 = arith.constant 0 : index
      %49 = vector.load %arg9[%c0_33, %c0_34] : memref<4x1xf32, #tpu.memory_space<vmem>>, vector<4x1xf32>
      tpu.vector_store %arg9[%c0_33, %c0_34], %48 {strides = array<i32>} : memref<4x1xf32, #tpu.memory_space<vmem>>, vector<4x1xf32>,
      %c0_i32_35 = arith.constant 0 : i32
      %50 = arith.cmpi eq, %arg1, %c0_i32_35 : i32
      %51 = arith.extui %50 : i1 to i32
      %c0_i32_36 = arith.constant 0 : i32
      %52 = arith.cmpi ne, %51, %c0_i32_36 : i32
      scf.if %52 {
        %c0_37 = arith.constant 0 : index
        %c0_38 = arith.constant 0 : index
        %53 = vector.load %arg7[%c0_37, %c0_38] : memref<4x1xf32, #tpu.memory_space<vmem>>, vector<4x1xf32>
        %c0_39 = arith.constant 0 : index
        %c0_40 = arith.constant 0 : index
        %54 = vector.load %arg8[%c0_39, %c0_40] : memref<4x1xf32, #tpu.memory_space<vmem>>, vector<4x1xf32>
        %55 = math.log %54 : vector<4x1xf32>
        %56 = arith.addf %53, %55 : vector<4x1xf32>
        %c0_41 = arith.constant 0 : index
        %c0_42 = arith.constant 0 : index
        %57 = vector.load %arg9[%c0_41, %c0_42] : memref<4x1xf32, #tpu.memory_space<vmem>>, vector<4x1xf32>
        %58 = arith.subf %56, %57 : vector<4x1xf32>
        %59 = vector.shape_cast %58 : vector<4x1xf32> to vector<1x4x1xf32>
        %cst_43 = arith.constant dense<0.000000e+00> : vector<1xf32>
        %60 = vector.multi_reduction <add>, %59, %cst_43 [1, 2] : vector<1x4x1xf32> to vector<1xf32>
        %61 = vector.shape_cast %60 : vector<1xf32> to vector<1x1x1xf32>
        %62 = vector.extract %61[0, 0, 0] : f32 from vector<1x1x1xf32>
        %63 = vector.broadcast %62 : f32 to vector<1x1x1xf32>
        %c0_44 = arith.constant 0 : index
        %c0_45 = arith.constant 0 : index
        %c0_46 = arith.constant 0 : index
        %64 = vector.load %arg5[%c0_44, %c0_45, %c0_46] : memref<1x1x1xf32, #tpu.memory_space<vmem>>, vector<1x1x1xf32>
        tpu.vector_store %arg5[%c0_44, %c0_45, %c0_46], %63 {strides = array<i32>} : memref<1x1x1xf32, #tpu.memory_space<vmem>>, vector<1x1x1xf32>,
      } else {
      }
    } else {
    }
    return
  }
  func.func @transform_0(%arg0: i32, %arg1: i32, %arg2: i32) -> (i32, i32, i32) {
    %c0_i32 = arith.constant 0 : i32
    return %arg0, %arg2, %arg1 : i32, i32, i32
  }
  func.func @transform_1(%arg0: i32, %arg1: i32, %arg2: i32) -> (i32, i32) {
    %c0_i32 = arith.constant 0 : i32
    %c0_i32_0 = arith.constant 0 : i32
    return %arg0, %c0_i32 : i32, i32
  }
  func.func @transform_2(%arg0: i32, %arg1: i32, %arg2: i32) -> (i32, i32, i32) {
    %c0_i32 = arith.constant 0 : i32
    %c0_i32_0 = arith.constant 0 : i32
    %c0_i32_1 = arith.constant 0 : i32
    return %arg0, %c0_i32, %c0_i32_0 : i32, i32, i32
  }
}

</mosaic_0001>

<llo_original>
// kernel: tpu_custom_call.1
$region0: #{tpu_custom_call.1}
  #allocation0 [shape = 'u32[]', space=smem, size = 0x4, offset = 0x4, fixed_abs, tag = 'smem constant byte address 0x4 - core index']
  #allocation1 [shape = 'u32[144,128]{1,0:T(1,128)}', space=vmem, size = 0x12000, scoped, tag = 'internal scratch']
  #allocation2 [shape = 'f32[4,32]{1,0:T(4,128)}', space=vmem, size = 0x800, scoped, tag = 'scratch operand']
  #allocation3 [shape = 'f32[4,1]{1,0:T(4,128)}', space=vmem, size = 0x800, scoped, tag = 'scratch operand']
  #allocation4 [shape = 'f32[4,1]{1,0:T(4,128)}', space=vmem, size = 0x800, scoped, tag = 'scratch operand']
  #allocation5 [shape = 'f32[4,1]{1,0:T(4,128)}', space=vmem, size = 0x800, scoped, tag = 'scratch operand']
  %s0 = inlined_call_operand.vmem [shape: f32[4,6,32], index: 0, kind: input, shape index: {}]
  %s1 = inlined_call_operand.vmem [shape: s32[4,1], index: 1, kind: input, shape index: {}]
  %s2 = inlined_call_operand.hbm [shape: f32[1,1,1], index: 2, kind: output, shape index: {}]
  %s3 = sld [smem:[#allocation0]]
  $region34: #{tpu_custom_call.1} parent=0
    _
  %s5 = ssub.s32 1, %s3
  %s6 = scalar_select 0, %s5, %s3
  $region1: #{tpu_custom_call.1} parent=0
    #allocation6 [shape = 'u8[512]{0}', space=vmem, size = 0x400, scoped, tag = 'output window, operand 0, single buffered']
    #allocation7 [shape = 's32[1]{0}', space=sflag, size = 0x4, scoped, tag = 'scoped memory for tpu_custom_call.1']
    %7 = vsyncpa [#allocation7], 0
    // Predicated region
    $region2: #{tpu_custom_call.1} parent=1 // pred_check
      _
    $region3: #{tpu_custom_call.1} parent=1 // pred_check_branch
      %9 = sbr.rel (0) target = $region5
    $region4: #{tpu_custom_call.1} parent=1 // pred_region
      _
    $region5: #{tpu_custom_call.1} parent=1 // pred_fallthru
      _
    // Predicated region
    $region6: #{tpu_custom_call.1} parent=1 // pred_check
      _
    $region7: #{tpu_custom_call.1} parent=1 // pred_check_branch
      %11 = sbr.rel (0) target = $region9
    $region8: #{tpu_custom_call.1} parent=1 // pred_region
      _
    $region9: #{tpu_custom_call.1} parent=1 // pred_fallthru
      _
    %p12 = scmp.eq.s32.totalorder 0, 0
    %p13 = scmp.eq.s32.totalorder 0, 0
    %p14 = pnand %p12, %p13
    %p15 = pneg %p14
    // Predicated region
    $region10: #{tpu_custom_call.1} parent=1 // pred_check
      _
    $region11: #{tpu_custom_call.1} parent=1 // pred_check_branch
      %17 = sbr.rel (%p14) target = $region13
    $region12: #{tpu_custom_call.1} parent=1 // pred_region
      %vm18 = vcmask 3072
      %19 = vst.msk [vmem:[#allocation3] sm:$0xf] %vm18, -inf
      %20 = vst.msk [vmem:[#allocation4] sm:$0xf] %vm18, 0.0
      %21 = vst.msk [vmem:[#allocation5] sm:$0xf] %vm18, 0.0
    $region13: #{tpu_custom_call.1} parent=1 // pred_fallthru
      _
    // Predicated region
    $region14: #{tpu_custom_call.1} parent=1 // pred_check
      %p22 = pneg %p13
    $region15: #{tpu_custom_call.1} parent=1 // pred_check_branch
      %24 = sbr.rel (%p22) target = $region17
    $region16: #{tpu_custom_call.1} parent=1 // pred_region
      %vm25 = vcmask 257024
      %26 = vst.msk [vmem:[#allocation2] sm:$0xf] %vm25, 0.0
    $region17: #{tpu_custom_call.1} parent=1 // pred_fallthru
      _
    %v27 = vld [vmem:[%s0] sm:$0x3f]
    %v28 = vld [vmem:[%s0 + $0x8] sm:$0x3f]
    %v29 = vld [vmem:[%s0 + $0x10] sm:$0x3f]
    %v30 = vld [vmem:[%s0 + $0x18] sm:$0x3f]
    %v31 = vld [vmem:[#allocation2] sm:$0xf]
    %vm32 = vcmask 259072
    %v33 = vsel %vm32, %v27, 0.0
    %v34 = vrot.slane %v33, 4
    %v35 = vadd.f32 %v33, %v34
    %v36 = vrot.slane %v35, 2
    %v37 = vadd.f32 %v35, %v36
    %v38 = vrot.slane %v37, 1
    %v39 = vadd.f32 %v37, %v38
    %v40 = vsel %vm32, %v28, 0.0
    %v41 = vrot.slane %v40, 4
    %v42 = vadd.f32 %v40, %v41
    %v43 = vrot.slane %v42, 2
    %v44 = vadd.f32 %v42, %v43
    %v45 = vrot.slane %v44, 1
    %v46 = vadd.f32 %v44, %v45
    %v47 = vsel %vm32, %v29, 0.0
    %v48 = vrot.slane %v47, 4
    %v49 = vadd.f32 %v47, %v48
    %v50 = vrot.slane %v49, 2
    %v51 = vadd.f32 %v49, %v50
    %v52 = vrot.slane %v51, 1
    %v53 = vadd.f32 %v51, %v52
    %v54 = vsel %vm32, %v30, 0.0
    %v55 = vrot.slane %v54, 4
    %v56 = vadd.f32 %v54, %v55
    %v57 = vrot.slane %v56, 2
    %v58 = vadd.f32 %v56, %v57
    %v59 = vrot.slane %v58, 1
    %v60 = vadd.f32 %v58, %v59
    %vm65 = vcmask 1041409
    %v66 = vsel %vm65, %v46, %v39
    %vm67 = vcmask 1042434
    %v68 = vsel %vm67, %v53, %v66
    %vm69 = vcmask 1043459
    %v70 = vsel %vm69, %v60, %v68
    %v72 = vadd.f32 %v31, %v70
    %vm73 = vcmask 257024
    %74 = vst.msk [vmem:[#allocation2] sm:$0xf] %vm73, %v72
    // Predicated region
    $region18: #{tpu_custom_call.1} parent=1 // pred_check
      %p75 = pneg %p13
    $region19: #{tpu_custom_call.1} parent=1 // pred_check_branch
      %77 = sbr.rel (%p75) target = $region21
    $region20: #{tpu_custom_call.1} parent=1 // pred_region
      %v78 = vld [vmem:[#allocation2] sm:$0xf]
      %v79 = vmul.f32 %v78, 0.16666667
      %v80 = vlaneseq
      %v81 = vand.u32 %v80, 127
      %s82 = smul.u32 0, 32
      %v83 = vstv %s82
      %v84 = vadd.s32 %v81, %v83
      %v85 = vsel %vm73, %v79, -inf
      %86 = vmax.xlane.f32.xlu0 %v85
      %v87 = vpop.xlane.xlu0 %86
      %v88 = vld [vmem:[#allocation3] sm:$0xf]
      %v89 = vmax.f32 %v88, %v87
      %v90 = vld [vmem:[#allocation4] sm:$0xf]
      %v91 = vsub.f32 %v88, %v89
      %v92 = vmul.f32 %v91, 1.442695
      %v93 = vpow.pop %v92
      %v94 = vmul.f32 %v90, %v93
      %96 = vset.pattern.permute.xlu0 0
      %97 = vperm.xlu0 %96, %v89
      %v98 = vpop.permute.xlu0 %97
      %v100 = vsub.f32 %v79, %v98
      %v101 = vmul.f32 %v100, 1.442695
      %v102 = vpow.pop %v101
      %v103 = vsel %vm73, %v102, 0.0
      %104 = vadd.xlane.f32.xlu0 %v103
      %v105 = vpop.xlane.xlu0 %104
      %v106 = vadd.f32 %v94, %v105
      %vm107 = vcmask 3072
      %108 = vst.msk [vmem:[#allocation4] sm:$0xf] %vm107, %v106
      %109 = vst.msk [vmem:[#allocation3] sm:$0xf] %vm107, %v89
      %v110 = vld [vmem:[%s1] sm:$0xf]
      %v111 = vld [vmem:[#allocation5] sm:$0xf]
      %112 = vset.pattern.permute.xlu0 0
      %113 = vperm.xlu0 %112, %v110
      %v114 = vpop.permute.xlu0 %113
      %vm115 = vcmp.eq.s32.totalorder %v84, %v114
      %v116 = vsel %vm115, %v79, 0.0
      %v117 = vsel %vm73, %v116, 0.0
      %118 = vadd.xlane.f32.xlu0 %v117
      %v119 = vpop.xlane.xlu0 %118
      %v120 = vadd.f32 %v111, %v119
      %121 = vst.msk [vmem:[#allocation5] sm:$0xf] %vm107, %v120
      // Predicated region
      $region22: #{tpu_custom_call.1} parent=20 // pred_check
        %p122 = pneg %p12
      $region23: #{tpu_custom_call.1} parent=20 // pred_check_branch
        %124 = sbr.rel (%p122) target = $region25
      $region24: #{tpu_custom_call.1} parent=20 // pred_region
        %v125 = vld [vmem:[#allocation3] sm:$0xf]
        %v126 = vld [vmem:[#allocation4] sm:$0xf]
        %v127 = vlog2.pop %v126
        %v128 = vmul.f32 %v127, 0.6931472
        %v129 = vadd.f32 %v125, %v128
        %v130 = vld [vmem:[#allocation5] sm:$0xf]
        %v131 = vsub.f32 %v129, %v130
        %v132 = vsel %vm107, %v131, 0.0
        %133 = vadd.xlane.f32.xlu0 %v132
        %v134 = vpop.xlane.xlu0 %133
        %v135 = vrot.slane %v134, 4
        %v136 = vadd.f32 %v134, %v135
        %v137 = vrot.slane %v136, 2
        %v138 = vadd.f32 %v136, %v137
        %v139 = vrot.slane %v138, 1
        %v140 = vadd.f32 %v138, %v139
        %s141 = vtos %v140
        %v142 = vstv %s141
        %vm143 = vcmask 0
        %144 = vst.msk [vmem:[#allocation6] sm:$0x1] %vm143, %v142
      $region25: #{tpu_custom_call.1} parent=20 // pred_fallthru
        _
    $region21: #{tpu_custom_call.1} parent=1 // pred_fallthru
      _
    // Predicated region
    $region26: #{tpu_custom_call.1} parent=1 // pred_check
      _
    $region27: #{tpu_custom_call.1} parent=1 // pred_check_branch
      %146 = sbr.rel (0) target = $region29
    $region28: #{tpu_custom_call.1} parent=1 // pred_region
      %s148 = ssub.s32 16, 16
      %149 = vsyncadd [#allocation7], %s148
      %s151 = sshll.u32 [#allocation6], 4
      %s152 = int_to_ptr.vmem [resolvable:$true] %s151
      %154 = dma.vmem_to_hbm [thread:$0]  %s152, 16, %s2, [#allocation7]
    $region29: #{tpu_custom_call.1} parent=1 // pred_fallthru
      _
    // Predicated region
    $region30: #{tpu_custom_call.1} parent=1 // pred_check
      _
    $region31: #{tpu_custom_call.1} parent=1 // pred_check_branch
      %156 = sbr.rel (0) target = $region33
    $region32: #{tpu_custom_call.1} parent=1 // pred_region
      %157 = dma.done [#allocation7], 16
    $region33: #{tpu_custom_call.1} parent=1 // pred_fallthru
      _
    %158 = vsyncpa [#allocation7], 1

</llo_original>
